<compile_context>
chip_gen: v5e
topology: v5e:2x2
jax: 0.10.0
libtpu: 0.0.40
codegen_flags: <defaults>
</compile_context>

<pallas_src>
import math

import jax
import jax.numpy as jnp
from jax.experimental import pallas as pl
from jax.experimental.pallas import tpu as pltpu


_LANE_CANDIDATES = (4096, 2048, 1024, 512, 256, 128)
_TARGET_TILE_BYTES = 4 * 1024 * 1024      # ~4 MiB tiles (review: v7x roofline)
_SMALL_BYPASS_ELEMS = 256 * 1024          # below this, plain jnp wins


# --------------------------------------------------------------------------- #
# Kernel
# --------------------------------------------------------------------------- #
def _g_kernel(t_ref, aty_ref, out_ref):
    # t_ref: (4,) f32 in SMEM -> [a4, a5, a6, b]; single tanh per vreg (EUP).
    a4 = t_ref[0]
    a5 = t_ref[1]
    a6 = t_ref[2]
    b = t_ref[3]
    x = aty_ref[...].astype(jnp.float32)
    out_ref[...] = (jnp.tanh(x * a5 + a6) * a4 + b).astype(out_ref.dtype)


def _g_jnp(aty, a4, a5, a6, b):
    """Plain-jnp fallback (tiny inputs and ragged tails)."""
    x = aty.astype(jnp.float32)
    return (jnp.tanh(x * a5 + a6) * a4 + b).astype(aty.dtype)


# --------------------------------------------------------------------------- #
# Tiling selection
# --------------------------------------------------------------------------- #
def _sublane_pack(dtype):
    """Native sublane packing factor for the dtype (8/16/32 rows per vreg)."""
    return {4: 8, 2: 16, 1: 32}.get(jnp.dtype(dtype).itemsize, 8)


def _divisors(n):
    out = []
    i = 1
    while i * i <= n:
        if n % i == 0:
            out.append(i)
            out.append(n // i)
        i += 1
    return out


def _choose_tiling(aligned_total, itemsize, sub):
    """Pick (rows, cols, bm): lane-dense cols, equal blocks, balanced grid."""
    cols = 128
    for c in _LANE_CANDIDATES:
        if aligned_total % c == 0:
            cols = c
            break
    rows = aligned_total // cols
    row_bytes = cols * itemsize

    # Prefer bm that divides rows exactly (no ragged last block), is a multiple
    # of the sublane packing, and keeps the tile <= ~4 MiB.
    exact = [d for d in _divisors(rows)
             if d % sub == 0 and d * row_bytes <= _TARGET_TILE_BYTES]
    if exact:
        def score(d):
            steps = rows // d
            return (steps >= 4 and steps % 2 == 0,   # both TCs, >=2 steps each
                    steps >= 2 and steps % 2 == 0,   # both TCs, equal work
                    steps >= 4,
                    steps >= 2,
                    d)                               # biggest tile within tier
        bm = max(exact, key=score)
    else:
        # No clean divisor: ~4 equal-ish blocks, partial (masked) last block.
        bm_cap = max(sub, (_TARGET_TILE_BYTES // row_bytes) // sub * sub)
        quarter = -(-rows // 4)                      # ceil(rows / 4)
        quarter = -(-quarter // sub) * sub           # round up to packing
        bm = max(sub, min(bm_cap, quarter, rows))
    return rows, cols, bm


# --------------------------------------------------------------------------- #
# Wrapper
# --------------------------------------------------------------------------- #
def x_update_dchannel_channel_g(ATy, x, t4, t5, t6, *, donate_input=False):
    """Elementwise gate g = (sigmoid(ATy*t5 + t6) - sigmoid(t6)) * t4.

    `x` is unused (matches the PyTorch forward).  `donate_input=True` aliases
    ATy's buffer with the output (only when the caller can donate ATy).
    """
    del x
    orig_shape = ATy.shape
    dtype = ATy.dtype
    total = math.prod(orig_shape) if orig_shape else 1

    # Fold constants on the wrapper side: one tanh per element in the kernel.
    t4s = jnp.asarray(t4, jnp.float32).reshape(())
    t5s = jnp.asarray(t5, jnp.float32).reshape(())
    t6s = jnp.asarray(t6, jnp.float32).reshape(())
    a4 = 0.5 * t4s
    a5 = 0.5 * t5s
    a6 = 0.5 * t6s
    b = 0.5 * t4s - t4s * jax.nn.sigmoid(t6s)

    # Small-input bypass: pallas_call fixed cost dominates tiny tensors.
    if total < _SMALL_BYPASS_ELEMS:
        return _g_jnp(ATy, a4, a5, a6, b)

    t_vec = jnp.stack([a4, a5, a6, b])
    itemsize = jnp.dtype(dtype).itemsize
    sub = _sublane_pack(dtype)

    flat = ATy.reshape(-1)
    aligned = (total // 128) * 128
    tail = total - aligned

    rows, cols, bm = _choose_tiling(aligned, itemsize, sub)
    if tail == 0:
        a2d = flat.reshape(rows, cols)
    else:
        a2d = flat[:aligned].reshape(rows, cols)

    extra = {}
    if donate_input:
        extra["input_output_aliases"] = {1: 0}   # a2d buffer -> output buffer

    out2d = pl.pallas_call(
        _g_kernel,
        out_shape=jax.ShapeDtypeStruct((rows, cols), dtype),
        grid_spec=pltpu.PrefetchScalarGridSpec(
            num_scalar_prefetch=0,
            grid=(pl.cdiv(rows, bm),),
            in_specs=[
                pl.BlockSpec(memory_space=pltpu.MemorySpace.SMEM),  # t_vec (4,)
                pl.BlockSpec((bm, cols), lambda i: (i, 0)),          # ATy tile
            ],
            out_specs=pl.BlockSpec((bm, cols), lambda i: (i, 0)),
        ),
        compiler_params=pltpu.CompilerParams(
            dimension_semantics=("parallel",),
            # 2 in-bufs + 2 out-bufs of ~4 MiB tiles ~= 16 MiB; 32 MiB limit
            # overrides v5e's 16 MiB scoped default and fits v6e/v7x.
            vmem_limit_bytes=32 * 1024 * 1024,
        ),
        **extra,
    )(t_vec, a2d)

    out_flat = out2d.reshape(-1)
    if tail:
        # Ragged (<128 elem) tail: compute with jnp, no full-array pad/slice.
        tail_out = _g_jnp(flat[aligned:], a4, a5, a6, b)
        out_flat = jnp.concatenate([out_flat, tail_out])
    return out_flat.reshape(orig_shape)


def _reference(ATy, t4, t5, t6):
    return (jax.nn.sigmoid(ATy * t5 + t6) - jax.nn.sigmoid(t6)) * t4


# --------------------------------------------------------------------------- #
# Demo / self-test
# --------------------------------------------------------------------------- #
if __name__ == "__main__":
    key = jax.random.PRNGKey(0)
    k_aty, k_x, k4, k5, k6, k_big, k_rag = jax.random.split(key, 7)

    # Scalar parameters (shape (1,1) in the PyTorch module).
    t4 = jax.random.normal(k4, (1, 1), dtype=jnp.float32)
    t5 = jax.random.normal(k5, (1, 1), dtype=jnp.float32)
    t6 = jax.random.normal(k6, (1, 1), dtype=jnp.float32)

    # Small NCHW demo consistent with the module (takes the jnp bypass path).
    B, C, H, W = 2, 4, 16, 16
    ATy = jax.random.normal(k_aty, (B, C, H, W), dtype=jnp.float32)
    xin = jax.random.normal(k_x, (B, C, H, W), dtype=jnp.float32)
    g = jax.block_until_ready(x_update_dchannel_channel_g(ATy, xin, t4, t5, t6))
    ref = _reference(ATy, t4[0, 0], t5[0, 0], t6[0, 0])
    assert g.shape == ATy.shape and g.dtype == ATy.dtype
    assert jnp.allclose(g, ref, atol=1e-5, rtol=1e-5), "mismatch (small/bypass)"

    # 128-aligned medium case -> exercises the Pallas kernel (4 equal steps).
    ATy_big = jax.random.normal(k_big, (2, 4, 256, 256), dtype=jnp.float32)
    g_big = jax.block_until_ready(
        x_update_dchannel_channel_g(ATy_big, None, t4, t5, t6))
    ref_big = _reference(ATy_big, t4[0, 0], t5[0, 0], t6[0, 0])
    assert g_big.shape == ATy_big.shape
    assert jnp.allclose(g_big, ref_big, atol=1e-5, rtol=1e-5), "mismatch (kernel)"

    # Element count NOT a multiple of 128 -> kernel prefix + jnp ragged tail.
    ATy_rag = jax.random.normal(k_rag, (2, 4, 257, 129), dtype=jnp.float32)
    g_rag = jax.block_until_ready(
        x_update_dchannel_channel_g(ATy_rag, None, t4, t5, t6))
    ref_rag = _reference(ATy_rag, t4[0, 0], t5[0, 0], t6[0, 0])
    assert g_rag.shape == ATy_rag.shape
    assert jnp.allclose(g_rag, ref_rag, atol=1e-5, rtol=1e-5), "mismatch (ragged)"

    print("KERNEL_OK")
</pallas_src>

<mosaic_0001>
module attributes {stable_mosaic.version = 11 : i64} {
  func.func @_g_kernel(%arg0: i32, %arg1: memref<4xf32, #tpu.memory_space<smem>>, %arg2: memref<32x4096xf32, #tpu.memory_space<vmem>>, %arg3: memref<32x4096xf32, #tpu.memory_space<vmem>>) attributes {dimension_semantics = [#tpu.dimension_semantics<parallel>], iteration_bounds = array<i64: 4>, scalar_prefetch = 0 : i64, scratch_operands = 0 : i64, tpu.core_type = #tpu.core_type<tc>, window_params = [{transform_indices = @transform_0, window_bounds = array<i64: 4>}, {transform_indices = @transform_1, window_bounds = array<i64: 32, 4096>}, {transform_indices = @transform_2, window_bounds = array<i64: 32, 4096>}]} {
    %c0 = arith.constant 0 : index
    %0 = memref.load %arg1[%c0] : memref<4xf32, #tpu.memory_space<smem>>
    %c1 = arith.constant 1 : index
    %1 = memref.load %arg1[%c1] : memref<4xf32, #tpu.memory_space<smem>>
    %c2 = arith.constant 2 : index
    %2 = memref.load %arg1[%c2] : memref<4xf32, #tpu.memory_space<smem>>
    %c3 = arith.constant 3 : index
    %3 = memref.load %arg1[%c3] : memref<4xf32, #tpu.memory_space<smem>>
    %c0_0 = arith.constant 0 : index
    %c0_1 = arith.constant 0 : index
    %4 = vector.load %arg2[%c0_0, %c0_1] : memref<32x4096xf32, #tpu.memory_space<vmem>>, vector<32x4096xf32>
    %5 = vector.broadcast %1 : f32 to vector<32x4096xf32>
    %6 = arith.mulf %4, %5 : vector<32x4096xf32>
    %7 = vector.broadcast %2 : f32 to vector<32x4096xf32>
    %8 = arith.addf %6, %7 : vector<32x4096xf32>
    %9 = math.tanh %8 : vector<32x4096xf32>
    %10 = vector.broadcast %0 : f32 to vector<32x4096xf32>
    %11 = arith.mulf %9, %10 : vector<32x4096xf32>
    %12 = vector.broadcast %3 : f32 to vector<32x4096xf32>
    %13 = arith.addf %11, %12 : vector<32x4096xf32>
    %c0_2 = arith.constant 0 : index
    %c0_3 = arith.constant 0 : index
    %14 = vector.load %arg3[%c0_2, %c0_3] : memref<32x4096xf32, #tpu.memory_space<vmem>>, vector<32x4096xf32>
    tpu.vector_store %arg3[%c0_2, %c0_3], %13 {strides = array<i32>} : memref<32x4096xf32, #tpu.memory_space<vmem>>, vector<32x4096xf32>,
    return
  }
  func.func @transform_0(%arg0: i32) -> i32 {
    %c0_i32 = arith.constant 0 : i32
    %c0_i32_0 = arith.constant 0 : i32
    return %c0_i32 : i32
  }
  func.func @transform_1(%arg0: i32) -> (i32, i32) {
    %c0_i32 = arith.constant 0 : i32
    %c0_i32_0 = arith.constant 0 : i32
    return %arg0, %c0_i32 : i32, i32
  }
  func.func @transform_2(%arg0: i32) -> (i32, i32) {
    %c0_i32 = arith.constant 0 : i32
    %c0_i32_0 = arith.constant 0 : i32
    return %arg0, %c0_i32 : i32, i32
  }
}

</mosaic_0001>

<llo_original>
// kernel: tpu_custom_call.1
$region0: #{tpu_custom_call.1}
  #allocation0 [shape = 'u32[]', space=smem, size = 0x4, offset = 0x4, fixed_abs, tag = 'smem constant byte address 0x4 - core index']
  #allocation1 [shape = 'u32[72,128]{1,0:T(1,128)}', space=vmem, size = 0x9000, scoped, tag = 'internal scratch']
  %s0 = inlined_call_operand.hbm [shape: f32[4], index: 0, kind: input, shape index: {}]
  %s1 = inlined_call_operand.hbm [shape: f32[128,4096], index: 1, kind: input, shape index: {}]
  %s2 = inlined_call_operand.hbm [shape: f32[128,4096], index: 2, kind: output, shape index: {}]
  %s3 = sld [smem:[#allocation0]]
  $region49: #{tpu_custom_call.1} parent=0
    _
  %s5 = ssub.s32 1, %s3
  %s6 = scalar_select 0, %s5, %s3
  $region1: #{tpu_custom_call.1} parent=0
    #allocation2 [shape = 'u8[512]{0}', space=smem, size = 0x200, scoped, tag = 'input window, operand 0, single buffered']
    #allocation3 [shape = 's32[2]{0}', space=sflag, size = 0x8, scoped, tag = 'scoped memory for tpu_custom_call.1']
    #allocation4 [shape = 's32[2]{0}', space=sflag, size = 0x8, scoped, tag = 'scoped memory for tpu_custom_call.1']
    #allocation5 [shape = 's32[2]{0}', space=sflag, size = 0x8, scoped, tag = 'scoped memory for tpu_custom_call.1']
    #allocation6 [shape = 'u8[1048576]{0}', space=vmem, size = 0x100000, scoped, tag = 'input window, operand 1']
    #allocation7 [shape = 'u8[1048576]{0}', space=vmem, size = 0x100000, scoped, tag = 'output window, operand 0']
    %7 = vsyncpa [#allocation5], 0
    %8 = vsyncpa [#allocation3], 0
    %s9 = scalar_lea.sflag [#allocation3], 1
    %10 = vsyncpa %s9, 0
    %11 = vsyncpa [#allocation4], 0
    %s12 = scalar_lea.sflag [#allocation4], 1
    %13 = vsyncpa %s12, 0
    loop: start=0, step=1, limit=6
    $region2: #{tpu_custom_call.1} parent=1 // loop_pre_header
      _
    $region3: #{tpu_custom_call.1} parent=1 // loop_header
      %s15 = sphi 0, %s19
      %p16 = scmp.ge.s32.totalorder %s15, 6
      %s23 = sphi 0, %s23
      %s25 = sphi 0, %s23
      %s26 = sphi 0, %s25
      %s40 = sphi 0, %s26
      %s46 = sphi 0, %s48
      %s49 = sphi 0, %s46
      %s50 = sphi 0, %s49
      %s66 = sphi 0, %s50
      %s72 = sphi 0, %s74
      %s75 = sphi 0, %s72
      %s76 = sphi 0, %s75
      %s92 = sphi 0, %s76
    $region4: #{tpu_custom_call.1} parent=1 // loop_header_branch
      %18 = sbr.rel (%p16) target = $region8
    $region5: #{tpu_custom_call.1} parent=1 // loop_body
      %s20 = ssub.s32 %s15, 1
      %s21 = ssub.s32 %s15, 2
      %s22 = sadd.s32 %s15, 1
      %s24 = sadd.s32 %s23, 1
      %p27 = scmp.eq.s32.totalorder %s15, 3
      %p28 = scmp.ne.s32.totalorder %s23, %s25
      %p29 = scmp.eq.s32.totalorder %s15, 0
      %p30 = por %p28, %p29
      %p31 = scmp.ne.s32.totalorder %s23, %s25
      %p32 = scmp.eq.s32.totalorder %s20, 3
      %p33 = por %p31, %p32
      %p34 = scmp.ne.s32.totalorder %s25, %s26
      %p35 = scmp.eq.s32.totalorder %s20, 0
      %p36 = por %p34, %p35
      %p37 = scmp.ne.s32.totalorder %s25, %s26
      %p38 = scmp.eq.s32.totalorder %s21, 3
      %p39 = por %p37, %p38
      %p41 = scmp.ne.s32.totalorder %s26, %s40
      %p42 = scmp.eq.s32.totalorder %s21, 0
      %p43 = por %p41, %p42
      %s44 = ssub.s32 %s15, %s22
      %p45 = scmp.eq.s32.totalorder %s44, 0
      %s47 = sadd.s32 %s46, 1
      %s48 = scalar_select %p45, %s46, %s47
      %p51 = pneg %p45
      %p52 = scmp.eq.s32.totalorder %s15, 3
      %p53 = por %p51, %p52
      %p54 = scmp.ne.s32.totalorder %s46, %s49
      %p55 = scmp.eq.s32.totalorder %s15, 0
      %p56 = por %p54, %p55
      %p57 = scmp.ne.s32.totalorder %s46, %s49
      %p58 = scmp.eq.s32.totalorder %s20, 3
      %p59 = por %p57, %p58
      %p60 = scmp.ne.s32.totalorder %s49, %s50
      %p61 = scmp.eq.s32.totalorder %s20, 0
      %p62 = por %p60, %p61
      %p63 = scmp.ne.s32.totalorder %s49, %s50
      %p64 = scmp.eq.s32.totalorder %s21, 3
      %p65 = por %p63, %p64
      %p67 = scmp.ne.s32.totalorder %s50, %s66
      %p68 = scmp.eq.s32.totalorder %s21, 0
      %p69 = por %p67, %p68
      %s70 = ssub.s32 %s15, %s22
      %p71 = scmp.eq.s32.totalorder %s70, 0
      %s73 = sadd.s32 %s72, 1
      %s74 = scalar_select %p71, %s72, %s73
      %p77 = pneg %p71
      %p78 = scmp.eq.s32.totalorder %s15, 3
      %p79 = por %p77, %p78
      %p80 = scmp.ne.s32.totalorder %s72, %s75
      %p81 = scmp.eq.s32.totalorder %s15, 0
      %p82 = por %p80, %p81
      %p83 = scmp.ne.s32.totalorder %s72, %s75
      %p84 = scmp.eq.s32.totalorder %s20, 3
      %p85 = por %p83, %p84
      %p86 = scmp.ne.s32.totalorder %s75, %s76
      %p87 = scmp.eq.s32.totalorder %s20, 0
      %p88 = por %p86, %p87
      %p89 = scmp.ne.s32.totalorder %s75, %s76
      %p90 = scmp.eq.s32.totalorder %s21, 3
      %p91 = por %p89, %p90
      %p93 = scmp.ne.s32.totalorder %s76, %s92
      %p94 = scmp.eq.s32.totalorder %s21, 0
      %p95 = por %p93, %p94
      %p96 = scmp.le.s32.totalorder 1, %s15
      %p97 = scmp.lt.s32.totalorder %s15, 5
      %p98 = pnand %p96, %p97
      %p99 = pneg %p98
      // Predicated region
      $region9: #{tpu_custom_call.1} parent=5 // pred_check
        _
      $region10: #{tpu_custom_call.1} parent=5 // pred_check_branch
        %101 = sbr.rel (%p98) target = $region12
      $region11: #{tpu_custom_call.1} parent=5 // pred_region
        %s102 = ssub.s32 %s15, 1
        // Predicated region
        $region13: #{tpu_custom_call.1} parent=11 // pred_check
          %p103 = pneg %p36
        $region14: #{tpu_custom_call.1} parent=11 // pred_check_branch
          %105 = sbr.rel (%p103) target = $region16
        $region15: #{tpu_custom_call.1} parent=11 // pred_region
          %107 = vsyncadd [#allocation5], 0
          %s109 = sshll.u32 %s0, 4
          %s110 = int_to_ptr.hbm [resolvable:$true] %s109
          %112 = dma.hbm_to_smem %s110, 16, [#allocation2], [#allocation5]
        $region16: #{tpu_custom_call.1} parent=11 // pred_fallthru
          _
      $region12: #{tpu_custom_call.1} parent=5 // pred_fallthru
        _
      %p113 = scmp.lt.s32.totalorder %s15, 4
      // Predicated region
      $region17: #{tpu_custom_call.1} parent=5 // pred_check
        %p114 = pneg %p113
      $region18: #{tpu_custom_call.1} parent=5 // pred_check_branch
        %116 = sbr.rel (%p114) target = $region20
      $region19: #{tpu_custom_call.1} parent=5 // pred_region
        // Predicated region
        $region21: #{tpu_custom_call.1} parent=19 // pred_check
          %p117 = pneg %p56
        $region22: #{tpu_custom_call.1} parent=19 // pred_check_branch
          %119 = sbr.rel (%p117) target = $region24
        $region23: #{tpu_custom_call.1} parent=19 // pred_region
          %s120 = sand.u32 %s46, 1
          %s121 = scalar_lea.sflag [#allocation3], %s120
          %s122 = sand.u32 %s46, 1
          %s123 = smul.addr %s122, 1024
          %s124 = scalar_lea.vmem [#allocation6], %s123
          %s125 = smul.u32 4, %s15
          %127 = vsyncadd %s121, 0
          %s128 = smul.addr %s125, 32
          %s129 = smul.addr %s128, 8
          %s130 = scalar_lea.hbm %s1, %s129
          %s131 = sshll.u32 %s130, 4
          %s132 = int_to_ptr.hbm [resolvable:$true] %s131
          %s133 = sshll.u32 %s124, 4
          %s134 = int_to_ptr.vmem [resolvable:$true] %s133
          %139 = dma.hbm_to_vmem [thread:$0]  %s132, 16384, %s134, %s121, 4096, 4096, 256
        $region24: #{tpu_custom_call.1} parent=19 // pred_fallthru
          _
      $region20: #{tpu_custom_call.1} parent=5 // pred_fallthru
        _
      %p140 = scmp.le.s32.totalorder 1, %s15
      %p141 = scmp.lt.s32.totalorder %s15, 5
      %p142 = pnand %p140, %p141
      %p143 = pneg %p142
      // Predicated region
      $region25: #{tpu_custom_call.1} parent=5 // pred_check
        _
      $region26: #{tpu_custom_call.1} parent=5 // pred_check_branch
        %145 = sbr.rel (%p142) target = $region28
      $region27: #{tpu_custom_call.1} parent=5 // pred_region
        %s146 = ssub.s32 %s15, 1
        // Predicated region
        $region29: #{tpu_custom_call.1} parent=27 // pred_check
          %p147 = pneg %p36
        $region30: #{tpu_custom_call.1} parent=27 // pred_check_branch
          %149 = sbr.rel (%p147) target = $region32
        $region31: #{tpu_custom_call.1} parent=27 // pred_region
          %151 = dma.done [#allocation5], 16
        $region32: #{tpu_custom_call.1} parent=27 // pred_fallthru
          _
        %s152 = sand.u32 %s49, 1
        %s153 = scalar_lea.sflag [#allocation3], %s152
        %s154 = sand.u32 %s49, 1
        %s155 = smul.addr %s154, 1024
        %s156 = scalar_lea.vmem [#allocation6], %s155
        // Predicated region
        $region33: #{tpu_custom_call.1} parent=27 // pred_check
          %p157 = pneg %p62
        $region34: #{tpu_custom_call.1} parent=27 // pred_check_branch
          %159 = sbr.rel (%p157) target = $region36
        $region35: #{tpu_custom_call.1} parent=27 // pred_region
          %161 = dma.done %s153, 16384
        $region36: #{tpu_custom_call.1} parent=27 // pred_fallthru
          _
        %162 = sfence
        %p163 = pneg %p36
        %p164 = pneg %p33
        %s165 = sand.u32 %s49, 1
        %s166 = scalar_lea.sflag [#allocation3], %s165
        %s167 = sand.u32 %s49, 1
        %s168 = smul.addr %s167, 1024
        %s169 = scalar_lea.vmem [#allocation6], %s168
        %p170 = pneg %p62
        %p171 = pneg %p59
        %p172 = pneg %p88
        %p173 = pneg %p85
        %s174 = sand.u32 %s75, 1
        %s175 = scalar_lea.sflag [#allocation4], %s174
        %s176 = sand.u32 %s75, 1
        %s177 = smul.addr %s176, 1024
        %s178 = scalar_lea.vmem [#allocation7], %s177
        %s179 = smul.u32 4, %s20
        %s180 = smul.u32 4, %s20
        %s181 = sld [smem:[#allocation2]]
        %s182 = sld [smem:[#allocation2 + $0x1]]
        %s183 = sld [smem:[#allocation2 + $0x2]]
        %s184 = sld [smem:[#allocation2 + $0x3]]
        %v185 = vld [vmem:[%s156] sm:$0xff]
        %v186 = vld [vmem:[%s156 + $0x8] sm:$0xff]
        %v187 = vld [vmem:[%s156 + $0x10] sm:$0xff]
        %v188 = vld [vmem:[%s156 + $0x18] sm:$0xff]
        %v189 = vld [vmem:[%s156 + $0x20] sm:$0xff]
        %v190 = vld [vmem:[%s156 + $0x28] sm:$0xff]
        %v191 = vld [vmem:[%s156 + $0x30] sm:$0xff]
        %v192 = vld [vmem:[%s156 + $0x38] sm:$0xff]
        %v193 = vld [vmem:[%s156 + $0x40] sm:$0xff]
        %v194 = vld [vmem:[%s156 + $0x48] sm:$0xff]
        %v195 = vld [vmem:[%s156 + $0x50] sm:$0xff]
        %v196 = vld [vmem:[%s156 + $0x58] sm:$0xff]
        %v197 = vld [vmem:[%s156 + $0x60] sm:$0xff]
        %v198 = vld [vmem:[%s156 + $0x68] sm:$0xff]
        %v199 = vld [vmem:[%s156 + $0x70] sm:$0xff]
        %v200 = vld [vmem:[%s156 + $0x78] sm:$0xff]
        %v201 = vld [vmem:[%s156 + $0x80] sm:$0xff]
        %v202 = vld [vmem:[%s156 + $0x88] sm:$0xff]
        %v203 = vld [vmem:[%s156 + $0x90] sm:$0xff]
        %v204 = vld [vmem:[%s156 + $0x98] sm:$0xff]
        %v205 = vld [vmem:[%s156 + $0xa0] sm:$0xff]
        %v206 = vld [vmem:[%s156 + $0xa8] sm:$0xff]
        %v207 = vld [vmem:[%s156 + $0xb0] sm:$0xff]
        %v208 = vld [vmem:[%s156 + $0xb8] sm:$0xff]
        %v209 = vld [vmem:[%s156 + $0xc0] sm:$0xff]
        %v210 = vld [vmem:[%s156 + $0xc8] sm:$0xff]
        %v211 = vld [vmem:[%s156 + $0xd0] sm:$0xff]
        %v212 = vld [vmem:[%s156 + $0xd8] sm:$0xff]
        %v213 = vld [vmem:[%s156 + $0xe0] sm:$0xff]
        %v214 = vld [vmem:[%s156 + $0xe8] sm:$0xff]
        %v215 = vld [vmem:[%s156 + $0xf0] sm:$0xff]
        %v216 = vld [vmem:[%s156 + $0xf8] sm:$0xff]
        %v217 = vld [vmem:[%s156 + $0x100] sm:$0xff]
        %v218 = vld [vmem:[%s156 + $0x108] sm:$0xff]
        %v219 = vld [vmem:[%s156 + $0x110] sm:$0xff]
        %v220 = vld [vmem:[%s156 + $0x118] sm:$0xff]
        %v221 = vld [vmem:[%s156 + $0x120] sm:$0xff]
        %v222 = vld [vmem:[%s156 + $0x128] sm:$0xff]
        %v223 = vld [vmem:[%s156 + $0x130] sm:$0xff]
        %v224 = vld [vmem:[%s156 + $0x138] sm:$0xff]
        %v225 = vld [vmem:[%s156 + $0x140] sm:$0xff]
        %v226 = vld [vmem:[%s156 + $0x148] sm:$0xff]
        %v227 = vld [vmem:[%s156 + $0x150] sm:$0xff]
        %v228 = vld [vmem:[%s156 + $0x158] sm:$0xff]
        %v229 = vld [vmem:[%s156 + $0x160] sm:$0xff]
        %v230 = vld [vmem:[%s156 + $0x168] sm:$0xff]
        %v231 = vld [vmem:[%s156 + $0x170] sm:$0xff]
        %v232 = vld [vmem:[%s156 + $0x178] sm:$0xff]
        %v233 = vld [vmem:[%s156 + $0x180] sm:$0xff]
        %v234 = vld [vmem:[%s156 + $0x188] sm:$0xff]
        %v235 = vld [vmem:[%s156 + $0x190] sm:$0xff]
        %v236 = vld [vmem:[%s156 + $0x198] sm:$0xff]
        %v237 = vld [vmem:[%s156 + $0x1a0] sm:$0xff]
        %v238 = vld [vmem:[%s156 + $0x1a8] sm:$0xff]
        %v239 = vld [vmem:[%s156 + $0x1b0] sm:$0xff]
        %v240 = vld [vmem:[%s156 + $0x1b8] sm:$0xff]
        %v241 = vld [vmem:[%s156 + $0x1c0] sm:$0xff]
        %v242 = vld [vmem:[%s156 + $0x1c8] sm:$0xff]
        %v243 = vld [vmem:[%s156 + $0x1d0] sm:$0xff]
        %v244 = vld [vmem:[%s156 + $0x1d8] sm:$0xff]
        %v245 = vld [vmem:[%s156 + $0x1e0] sm:$0xff]
        %v246 = vld [vmem:[%s156 + $0x1e8] sm:$0xff]
        %v247 = vld [vmem:[%s156 + $0x1f0] sm:$0xff]
        %v248 = vld [vmem:[%s156 + $0x1f8] sm:$0xff]
        %v249 = vld [vmem:[%s156 + $0x200] sm:$0xff]
        %v250 = vld [vmem:[%s156 + $0x208] sm:$0xff]
        %v251 = vld [vmem:[%s156 + $0x210] sm:$0xff]
        %v252 = vld [vmem:[%s156 + $0x218] sm:$0xff]
        %v253 = vld [vmem:[%s156 + $0x220] sm:$0xff]
        %v254 = vld [vmem:[%s156 + $0x228] sm:$0xff]
        %v255 = vld [vmem:[%s156 + $0x230] sm:$0xff]
        %v256 = vld [vmem:[%s156 + $0x238] sm:$0xff]
        %v257 = vld [vmem:[%s156 + $0x240] sm:$0xff]
        %v258 = vld [vmem:[%s156 + $0x248] sm:$0xff]
        %v259 = vld [vmem:[%s156 + $0x250] sm:$0xff]
        %v260 = vld [vmem:[%s156 + $0x258] sm:$0xff]
        %v261 = vld [vmem:[%s156 + $0x260] sm:$0xff]
        %v262 = vld [vmem:[%s156 + $0x268] sm:$0xff]
        %v263 = vld [vmem:[%s156 + $0x270] sm:$0xff]
        %v264 = vld [vmem:[%s156 + $0x278] sm:$0xff]
        %v265 = vld [vmem:[%s156 + $0x280] sm:$0xff]
        %v266 = vld [vmem:[%s156 + $0x288] sm:$0xff]
        %v267 = vld [vmem:[%s156 + $0x290] sm:$0xff]
        %v268 = vld [vmem:[%s156 + $0x298] sm:$0xff]
        %v269 = vld [vmem:[%s156 + $0x2a0] sm:$0xff]
        %v270 = vld [vmem:[%s156 + $0x2a8] sm:$0xff]
        %v271 = vld [vmem:[%s156 + $0x2b0] sm:$0xff]
        %v272 = vld [vmem:[%s156 + $0x2b8] sm:$0xff]
        %v273 = vld [vmem:[%s156 + $0x2c0] sm:$0xff]
        %v274 = vld [vmem:[%s156 + $0x2c8] sm:$0xff]
        %v275 = vld [vmem:[%s156 + $0x2d0] sm:$0xff]
        %v276 = vld [vmem:[%s156 + $0x2d8] sm:$0xff]
        %v277 = vld [vmem:[%s156 + $0x2e0] sm:$0xff]
        %v278 = vld [vmem:[%s156 + $0x2e8] sm:$0xff]
        %v279 = vld [vmem:[%s156 + $0x2f0] sm:$0xff]
        %v280 = vld [vmem:[%s156 + $0x2f8] sm:$0xff]
        %v281 = vld [vmem:[%s156 + $0x300] sm:$0xff]
        %v282 = vld [vmem:[%s156 + $0x308] sm:$0xff]
        %v283 = vld [vmem:[%s156 + $0x310] sm:$0xff]
        %v284 = vld [vmem:[%s156 + $0x318] sm:$0xff]
        %v285 = vld [vmem:[%s156 + $0x320] sm:$0xff]
        %v286 = vld [vmem:[%s156 + $0x328] sm:$0xff]
        %v287 = vld [vmem:[%s156 + $0x330] sm:$0xff]
        %v288 = vld [vmem:[%s156 + $0x338] sm:$0xff]
        %v289 = vld [vmem:[%s156 + $0x340] sm:$0xff]
        %v290 = vld [vmem:[%s156 + $0x348] sm:$0xff]
        %v291 = vld [vmem:[%s156 + $0x350] sm:$0xff]
        %v292 = vld [vmem:[%s156 + $0x358] sm:$0xff]
        %v293 = vld [vmem:[%s156 + $0x360] sm:$0xff]
        %v294 = vld [vmem:[%s156 + $0x368] sm:$0xff]
        %v295 = vld [vmem:[%s156 + $0x370] sm:$0xff]
        %v296 = vld [vmem:[%s156 + $0x378] sm:$0xff]
        %v297 = vld [vmem:[%s156 + $0x380] sm:$0xff]
        %v298 = vld [vmem:[%s156 + $0x388] sm:$0xff]
        %v299 = vld [vmem:[%s156 + $0x390] sm:$0xff]
        %v300 = vld [vmem:[%s156 + $0x398] sm:$0xff]
        %v301 = vld [vmem:[%s156 + $0x3a0] sm:$0xff]
        %v302 = vld [vmem:[%s156 + $0x3a8] sm:$0xff]
        %v303 = vld [vmem:[%s156 + $0x3b0] sm:$0xff]
        %v304 = vld [vmem:[%s156 + $0x3b8] sm:$0xff]
        %v305 = vld [vmem:[%s156 + $0x3c0] sm:$0xff]
        %v306 = vld [vmem:[%s156 + $0x3c8] sm:$0xff]
        %v307 = vld [vmem:[%s156 + $0x3d0] sm:$0xff]
        %v308 = vld [vmem:[%s156 + $0x3d8] sm:$0xff]
        %v309 = vld [vmem:[%s156 + $0x3e0] sm:$0xff]
        %v310 = vld [vmem:[%s156 + $0x3e8] sm:$0xff]
        %v311 = vld [vmem:[%s156 + $0x3f0] sm:$0xff]
        %v312 = vld [vmem:[%s156 + $0x3f8] sm:$0xff]
        %v313 = vstv %s182
        %v314 = vmul.f32 %v185, %v313
        %v315 = vmul.f32 %v186, %v313
        %v316 = vmul.f32 %v187, %v313
        %v317 = vmul.f32 %v188, %v313
        %v318 = vmul.f32 %v189, %v313
        %v319 = vmul.f32 %v190, %v313
        %v320 = vmul.f32 %v191, %v313
        %v321 = vmul.f32 %v192, %v313
        %v322 = vmul.f32 %v193, %v313
        %v323 = vmul.f32 %v194, %v313
        %v324 = vmul.f32 %v195, %v313
        %v325 = vmul.f32 %v196, %v313
        %v326 = vmul.f32 %v197, %v313
        %v327 = vmul.f32 %v198, %v313
        %v328 = vmul.f32 %v199, %v313
        %v329 = vmul.f32 %v200, %v313
        %v330 = vmul.f32 %v201, %v313
        %v331 = vmul.f32 %v202, %v313
        %v332 = vmul.f32 %v203, %v313
        %v333 = vmul.f32 %v204, %v313
        %v334 = vmul.f32 %v205, %v313
        %v335 = vmul.f32 %v206, %v313
        %v336 = vmul.f32 %v207, %v313
        %v337 = vmul.f32 %v208, %v313
        %v338 = vmul.f32 %v209, %v313
        %v339 = vmul.f32 %v210, %v313
        %v340 = vmul.f32 %v211, %v313
        %v341 = vmul.f32 %v212, %v313
        %v342 = vmul.f32 %v213, %v313
        %v343 = vmul.f32 %v214, %v313
        %v344 = vmul.f32 %v215, %v313
        %v345 = vmul.f32 %v216, %v313
        %v346 = vmul.f32 %v217, %v313
        %v347 = vmul.f32 %v218, %v313
        %v348 = vmul.f32 %v219, %v313
        %v349 = vmul.f32 %v220, %v313
        %v350 = vmul.f32 %v221, %v313
        %v351 = vmul.f32 %v222, %v313
        %v352 = vmul.f32 %v223, %v313
        %v353 = vmul.f32 %v224, %v313
        %v354 = vmul.f32 %v225, %v313
        %v355 = vmul.f32 %v226, %v313
        %v356 = vmul.f32 %v227, %v313
        %v357 = vmul.f32 %v228, %v313
        %v358 = vmul.f32 %v229, %v313
        %v359 = vmul.f32 %v230, %v313
        %v360 = vmul.f32 %v231, %v313
        %v361 = vmul.f32 %v232, %v313
        %v362 = vmul.f32 %v233, %v313
        %v363 = vmul.f32 %v234, %v313
        %v364 = vmul.f32 %v235, %v313
        %v365 = vmul.f32 %v236, %v313
        %v366 = vmul.f32 %v237, %v313
        %v367 = vmul.f32 %v238, %v313
        %v368 = vmul.f32 %v239, %v313
        %v369 = vmul.f32 %v240, %v313
        %v370 = vmul.f32 %v241, %v313
        %v371 = vmul.f32 %v242, %v313
        %v372 = vmul.f32 %v243, %v313
        %v373 = vmul.f32 %v244, %v313
        %v374 = vmul.f32 %v245, %v313
        %v375 = vmul.f32 %v246, %v313
        %v376 = vmul.f32 %v247, %v313
        %v377 = vmul.f32 %v248, %v313
        %v378 = vmul.f32 %v249, %v313
        %v379 = vmul.f32 %v250, %v313
        %v380 = vmul.f32 %v251, %v313
        %v381 = vmul.f32 %v252, %v313
        %v382 = vmul.f32 %v253, %v313
        %v383 = vmul.f32 %v254, %v313
        %v384 = vmul.f32 %v255, %v313
        %v385 = vmul.f32 %v256, %v313
        %v386 = vmul.f32 %v257, %v313
        %v387 = vmul.f32 %v258, %v313
        %v388 = vmul.f32 %v259, %v313
        %v389 = vmul.f32 %v260, %v313
        %v390 = vmul.f32 %v261, %v313
        %v391 = vmul.f32 %v262, %v313
        %v392 = vmul.f32 %v263, %v313
        %v393 = vmul.f32 %v264, %v313
        %v394 = vmul.f32 %v265, %v313
        %v395 = vmul.f32 %v266, %v313
        %v396 = vmul.f32 %v267, %v313
        %v397 = vmul.f32 %v268, %v313
        %v398 = vmul.f32 %v269, %v313
        %v399 = vmul.f32 %v270, %v313
        %v400 = vmul.f32 %v271, %v313
        %v401 = vmul.f32 %v272, %v313
        %v402 = vmul.f32 %v273, %v313
        %v403 = vmul.f32 %v274, %v313
        %v404 = vmul.f32 %v275, %v313
        %v405 = vmul.f32 %v276, %v313
        %v406 = vmul.f32 %v277, %v313
        %v407 = vmul.f32 %v278, %v313
        %v408 = vmul.f32 %v279, %v313
        %v409 = vmul.f32 %v280, %v313
        %v410 = vmul.f32 %v281, %v313
        %v411 = vmul.f32 %v282, %v313
        %v412 = vmul.f32 %v283, %v313
        %v413 = vmul.f32 %v284, %v313
        %v414 = vmul.f32 %v285, %v313
        %v415 = vmul.f32 %v286, %v313
        %v416 = vmul.f32 %v287, %v313
        %v417 = vmul.f32 %v288, %v313
        %v418 = vmul.f32 %v289, %v313
        %v419 = vmul.f32 %v290, %v313
        %v420 = vmul.f32 %v291, %v313
        %v421 = vmul.f32 %v292, %v313
        %v422 = vmul.f32 %v293, %v313
        %v423 = vmul.f32 %v294, %v313
        %v424 = vmul.f32 %v295, %v313
        %v425 = vmul.f32 %v296, %v313
        %v426 = vmul.f32 %v297, %v313
        %v427 = vmul.f32 %v298, %v313
        %v428 = vmul.f32 %v299, %v313
        %v429 = vmul.f32 %v300, %v313
        %v430 = vmul.f32 %v301, %v313
        %v431 = vmul.f32 %v302, %v313
        %v432 = vmul.f32 %v303, %v313
        %v433 = vmul.f32 %v304, %v313
        %v434 = vmul.f32 %v305, %v313
        %v435 = vmul.f32 %v306, %v313
        %v436 = vmul.f32 %v307, %v313
        %v437 = vmul.f32 %v308, %v313
        %v438 = vmul.f32 %v309, %v313
        %v439 = vmul.f32 %v310, %v313
        %v440 = vmul.f32 %v311, %v313
        %v441 = vmul.f32 %v312, %v313
        %v442 = vstv %s183
        %v443 = vadd.f32 %v314, %v442
        %v444 = vadd.f32 %v315, %v442
        %v445 = vadd.f32 %v316, %v442
        %v446 = vadd.f32 %v317, %v442
        %v447 = vadd.f32 %v318, %v442
        %v448 = vadd.f32 %v319, %v442
        %v449 = vadd.f32 %v320, %v442
        %v450 = vadd.f32 %v321, %v442
        %v451 = vadd.f32 %v322, %v442
        %v452 = vadd.f32 %v323, %v442
        %v453 = vadd.f32 %v324, %v442
        %v454 = vadd.f32 %v325, %v442
        %v455 = vadd.f32 %v326, %v442
        %v456 = vadd.f32 %v327, %v442
        %v457 = vadd.f32 %v328, %v442
        %v458 = vadd.f32 %v329, %v442
        %v459 = vadd.f32 %v330, %v442
        %v460 = vadd.f32 %v331, %v442
        %v461 = vadd.f32 %v332, %v442
        %v462 = vadd.f32 %v333, %v442
        %v463 = vadd.f32 %v334, %v442
        %v464 = vadd.f32 %v335, %v442
        %v465 = vadd.f32 %v336, %v442
        %v466 = vadd.f32 %v337, %v442
        %v467 = vadd.f32 %v338, %v442
        %v468 = vadd.f32 %v339, %v442
        %v469 = vadd.f32 %v340, %v442
        %v470 = vadd.f32 %v341, %v442
        %v471 = vadd.f32 %v342, %v442
        %v472 = vadd.f32 %v343, %v442
        %v473 = vadd.f32 %v344, %v442
        %v474 = vadd.f32 %v345, %v442
        %v475 = vadd.f32 %v346, %v442
        %v476 = vadd.f32 %v347, %v442
        %v477 = vadd.f32 %v348, %v442
        %v478 = vadd.f32 %v349, %v442
        %v479 = vadd.f32 %v350, %v442
        %v480 = vadd.f32 %v351, %v442
        %v481 = vadd.f32 %v352, %v442
        %v482 = vadd.f32 %v353, %v442
        %v483 = vadd.f32 %v354, %v442
        %v484 = vadd.f32 %v355, %v442
        %v485 = vadd.f32 %v356, %v442
        %v486 = vadd.f32 %v357, %v442
        %v487 = vadd.f32 %v358, %v442
        %v488 = vadd.f32 %v359, %v442
        %v489 = vadd.f32 %v360, %v442
        %v490 = vadd.f32 %v361, %v442
        %v491 = vadd.f32 %v362, %v442
        %v492 = vadd.f32 %v363, %v442
        %v493 = vadd.f32 %v364, %v442
        %v494 = vadd.f32 %v365, %v442
        %v495 = vadd.f32 %v366, %v442
        %v496 = vadd.f32 %v367, %v442
        %v497 = vadd.f32 %v368, %v442
        %v498 = vadd.f32 %v369, %v442
        %v499 = vadd.f32 %v370, %v442
        %v500 = vadd.f32 %v371, %v442
        %v501 = vadd.f32 %v372, %v442
        %v502 = vadd.f32 %v373, %v442
        %v503 = vadd.f32 %v374, %v442
        %v504 = vadd.f32 %v375, %v442
        %v505 = vadd.f32 %v376, %v442
        %v506 = vadd.f32 %v377, %v442
        %v507 = vadd.f32 %v378, %v442
        %v508 = vadd.f32 %v379, %v442
        %v509 = vadd.f32 %v380, %v442
        %v510 = vadd.f32 %v381, %v442
        %v511 = vadd.f32 %v382, %v442
        %v512 = vadd.f32 %v383, %v442
        %v513 = vadd.f32 %v384, %v442
        %v514 = vadd.f32 %v385, %v442
        %v515 = vadd.f32 %v386, %v442
        %v516 = vadd.f32 %v387, %v442
        %v517 = vadd.f32 %v388, %v442
        %v518 = vadd.f32 %v389, %v442
        %v519 = vadd.f32 %v390, %v442
        %v520 = vadd.f32 %v391, %v442
        %v521 = vadd.f32 %v392, %v442
        %v522 = vadd.f32 %v393, %v442
        %v523 = vadd.f32 %v394, %v442
        %v524 = vadd.f32 %v395, %v442
        %v525 = vadd.f32 %v396, %v442
        %v526 = vadd.f32 %v397, %v442
        %v527 = vadd.f32 %v398, %v442
        %v528 = vadd.f32 %v399, %v442
        %v529 = vadd.f32 %v400, %v442
        %v530 = vadd.f32 %v401, %v442
        %v531 = vadd.f32 %v402, %v442
        %v532 = vadd.f32 %v403, %v442
        %v533 = vadd.f32 %v404, %v442
        %v534 = vadd.f32 %v405, %v442
        %v535 = vadd.f32 %v406, %v442
        %v536 = vadd.f32 %v407, %v442
        %v537 = vadd.f32 %v408, %v442
        %v538 = vadd.f32 %v409, %v442
        %v539 = vadd.f32 %v410, %v442
        %v540 = vadd.f32 %v411, %v442
        %v541 = vadd.f32 %v412, %v442
        %v542 = vadd.f32 %v413, %v442
        %v543 = vadd.f32 %v414, %v442
        %v544 = vadd.f32 %v415, %v442
        %v545 = vadd.f32 %v416, %v442
        %v546 = vadd.f32 %v417, %v442
        %v547 = vadd.f32 %v418, %v442
        %v548 = vadd.f32 %v419, %v442
        %v549 = vadd.f32 %v420, %v442
        %v550 = vadd.f32 %v421, %v442
        %v551 = vadd.f32 %v422, %v442
        %v552 = vadd.f32 %v423, %v442
        %v553 = vadd.f32 %v424, %v442
        %v554 = vadd.f32 %v425, %v442
        %v555 = vadd.f32 %v426, %v442
        %v556 = vadd.f32 %v427, %v442
        %v557 = vadd.f32 %v428, %v442
        %v558 = vadd.f32 %v429, %v442
        %v559 = vadd.f32 %v430, %v442
        %v560 = vadd.f32 %v431, %v442
        %v561 = vadd.f32 %v432, %v442
        %v562 = vadd.f32 %v433, %v442
        %v563 = vadd.f32 %v434, %v442
        %v564 = vadd.f32 %v435, %v442
        %v565 = vadd.f32 %v436, %v442
        %v566 = vadd.f32 %v437, %v442
        %v567 = vadd.f32 %v438, %v442
        %v568 = vadd.f32 %v439, %v442
        %v569 = vadd.f32 %v440, %v442
        %v570 = vadd.f32 %v441, %v442
        %v571 = vtanh.pop %v443
        %v572 = vtanh.pop %v444
        %v573 = vtanh.pop %v445
        %v574 = vtanh.pop %v446
        %v575 = vtanh.pop %v447
        %v576 = vtanh.pop %v448
        %v577 = vtanh.pop %v449
        %v578 = vtanh.pop %v450
        %v579 = vtanh.pop %v451
        %v580 = vtanh.pop %v452
        %v581 = vtanh.pop %v453
        %v582 = vtanh.pop %v454
        %v583 = vtanh.pop %v455
        %v584 = vtanh.pop %v456
        %v585 = vtanh.pop %v457
        %v586 = vtanh.pop %v458
        %v587 = vtanh.pop %v459
        %v588 = vtanh.pop %v460
        %v589 = vtanh.pop %v461
        %v590 = vtanh.pop %v462
        %v591 = vtanh.pop %v463
        %v592 = vtanh.pop %v464
        %v593 = vtanh.pop %v465
        %v594 = vtanh.pop %v466
        %v595 = vtanh.pop %v467
        %v596 = vtanh.pop %v468
        %v597 = vtanh.pop %v469
        %v598 = vtanh.pop %v470
        %v599 = vtanh.pop %v471
        %v600 = vtanh.pop %v472
        %v601 = vtanh.pop %v473
        %v602 = vtanh.pop %v474
        %v603 = vtanh.pop %v475
        %v604 = vtanh.pop %v476
        %v605 = vtanh.pop %v477
        %v606 = vtanh.pop %v478
        %v607 = vtanh.pop %v479
        %v608 = vtanh.pop %v480
        %v609 = vtanh.pop %v481
        %v610 = vtanh.pop %v482
        %v611 = vtanh.pop %v483
        %v612 = vtanh.pop %v484
        %v613 = vtanh.pop %v485
        %v614 = vtanh.pop %v486
        %v615 = vtanh.pop %v487
        %v616 = vtanh.pop %v488
        %v617 = vtanh.pop %v489
        %v618 = vtanh.pop %v490
        %v619 = vtanh.pop %v491
        %v620 = vtanh.pop %v492
        %v621 = vtanh.pop %v493
        %v622 = vtanh.pop %v494
        %v623 = vtanh.pop %v495
        %v624 = vtanh.pop %v496
        %v625 = vtanh.pop %v497
        %v626 = vtanh.pop %v498
        %v627 = vtanh.pop %v499
        %v628 = vtanh.pop %v500
        %v629 = vtanh.pop %v501
        %v630 = vtanh.pop %v502
        %v631 = vtanh.pop %v503
        %v632 = vtanh.pop %v504
        %v633 = vtanh.pop %v505
        %v634 = vtanh.pop %v506
        %v635 = vtanh.pop %v507
        %v636 = vtanh.pop %v508
        %v637 = vtanh.pop %v509
        %v638 = vtanh.pop %v510
        %v639 = vtanh.pop %v511
        %v640 = vtanh.pop %v512
        %v641 = vtanh.pop %v513
        %v642 = vtanh.pop %v514
        %v643 = vtanh.pop %v515
        %v644 = vtanh.pop %v516
        %v645 = vtanh.pop %v517
        %v646 = vtanh.pop %v518
        %v647 = vtanh.pop %v519
        %v648 = vtanh.pop %v520
        %v649 = vtanh.pop %v521
        %v650 = vtanh.pop %v522
        %v651 = vtanh.pop %v523
        %v652 = vtanh.pop %v524
        %v653 = vtanh.pop %v525
        %v654 = vtanh.pop %v526
        %v655 = vtanh.pop %v527
        %v656 = vtanh.pop %v528
        %v657 = vtanh.pop %v529
        %v658 = vtanh.pop %v530
        %v659 = vtanh.pop %v531
        %v660 = vtanh.pop %v532
        %v661 = vtanh.pop %v533
        %v662 = vtanh.pop %v534
        %v663 = vtanh.pop %v535
        %v664 = vtanh.pop %v536
        %v665 = vtanh.pop %v537
        %v666 = vtanh.pop %v538
        %v667 = vtanh.pop %v539
        %v668 = vtanh.pop %v540
        %v669 = vtanh.pop %v541
        %v670 = vtanh.pop %v542
        %v671 = vtanh.pop %v543
        %v672 = vtanh.pop %v544
        %v673 = vtanh.pop %v545
        %v674 = vtanh.pop %v546
        %v675 = vtanh.pop %v547
        %v676 = vtanh.pop %v548
        %v677 = vtanh.pop %v549
        %v678 = vtanh.pop %v550
        %v679 = vtanh.pop %v551
        %v680 = vtanh.pop %v552
        %v681 = vtanh.pop %v553
        %v682 = vtanh.pop %v554
        %v683 = vtanh.pop %v555
        %v684 = vtanh.pop %v556
        %v685 = vtanh.pop %v557
        %v686 = vtanh.pop %v558
        %v687 = vtanh.pop %v559
        %v688 = vtanh.pop %v560
        %v689 = vtanh.pop %v561
        %v690 = vtanh.pop %v562
        %v691 = vtanh.pop %v563
        %v692 = vtanh.pop %v564
        %v693 = vtanh.pop %v565
        %v694 = vtanh.pop %v566
        %v695 = vtanh.pop %v567
        %v696 = vtanh.pop %v568
        %v697 = vtanh.pop %v569
        %v698 = vtanh.pop %v570
        %v699 = vstv %s181
        %v700 = vmul.f32 %v571, %v699
        %v701 = vmul.f32 %v572, %v699
        %v702 = vmul.f32 %v573, %v699
        %v703 = vmul.f32 %v574, %v699
        %v704 = vmul.f32 %v575, %v699
        %v705 = vmul.f32 %v576, %v699
        %v706 = vmul.f32 %v577, %v699
        %v707 = vmul.f32 %v578, %v699
        %v708 = vmul.f32 %v579, %v699
        %v709 = vmul.f32 %v580, %v699
        %v710 = vmul.f32 %v581, %v699
        %v711 = vmul.f32 %v582, %v699
        %v712 = vmul.f32 %v583, %v699
        %v713 = vmul.f32 %v584, %v699
        %v714 = vmul.f32 %v585, %v699
        %v715 = vmul.f32 %v586, %v699
        %v716 = vmul.f32 %v587, %v699
        %v717 = vmul.f32 %v588, %v699
        %v718 = vmul.f32 %v589, %v699
        %v719 = vmul.f32 %v590, %v699
        %v720 = vmul.f32 %v591, %v699
        %v721 = vmul.f32 %v592, %v699
        %v722 = vmul.f32 %v593, %v699
        %v723 = vmul.f32 %v594, %v699
        %v724 = vmul.f32 %v595, %v699
        %v725 = vmul.f32 %v596, %v699
        %v726 = vmul.f32 %v597, %v699
        %v727 = vmul.f32 %v598, %v699
        %v728 = vmul.f32 %v599, %v699
        %v729 = vmul.f32 %v600, %v699
        %v730 = vmul.f32 %v601, %v699
        %v731 = vmul.f32 %v602, %v699
        %v732 = vmul.f32 %v603, %v699
        %v733 = vmul.f32 %v604, %v699
        %v734 = vmul.f32 %v605, %v699
        %v735 = vmul.f32 %v606, %v699
        %v736 = vmul.f32 %v607, %v699
        %v737 = vmul.f32 %v608, %v699
        %v738 = vmul.f32 %v609, %v699
        %v739 = vmul.f32 %v610, %v699
        %v740 = vmul.f32 %v611, %v699
        %v741 = vmul.f32 %v612, %v699
        %v742 = vmul.f32 %v613, %v699
        %v743 = vmul.f32 %v614, %v699
        %v744 = vmul.f32 %v615, %v699
        %v745 = vmul.f32 %v616, %v699
        %v746 = vmul.f32 %v617, %v699
        %v747 = vmul.f32 %v618, %v699
        %v748 = vmul.f32 %v619, %v699
        %v749 = vmul.f32 %v620, %v699
        %v750 = vmul.f32 %v621, %v699
        %v751 = vmul.f32 %v622, %v699
        %v752 = vmul.f32 %v623, %v699
        %v753 = vmul.f32 %v624, %v699
        %v754 = vmul.f32 %v625, %v699
        %v755 = vmul.f32 %v626, %v699
        %v756 = vmul.f32 %v627, %v699
        %v757 = vmul.f32 %v628, %v699
        %v758 = vmul.f32 %v629, %v699
        %v759 = vmul.f32 %v630, %v699
        %v760 = vmul.f32 %v631, %v699
        %v761 = vmul.f32 %v632, %v699
        %v762 = vmul.f32 %v633, %v699
        %v763 = vmul.f32 %v634, %v699
        %v764 = vmul.f32 %v635, %v699
        %v765 = vmul.f32 %v636, %v699
        %v766 = vmul.f32 %v637, %v699
        %v767 = vmul.f32 %v638, %v699
        %v768 = vmul.f32 %v639, %v699
        %v769 = vmul.f32 %v640, %v699
        %v770 = vmul.f32 %v641, %v699
        %v771 = vmul.f32 %v642, %v699
        %v772 = vmul.f32 %v643, %v699
        %v773 = vmul.f32 %v644, %v699
        %v774 = vmul.f32 %v645, %v699
        %v775 = vmul.f32 %v646, %v699
        %v776 = vmul.f32 %v647, %v699
        %v777 = vmul.f32 %v648, %v699
        %v778 = vmul.f32 %v649, %v699
        %v779 = vmul.f32 %v650, %v699
        %v780 = vmul.f32 %v651, %v699
        %v781 = vmul.f32 %v652, %v699
        %v782 = vmul.f32 %v653, %v699
        %v783 = vmul.f32 %v654, %v699
        %v784 = vmul.f32 %v655, %v699
        %v785 = vmul.f32 %v656, %v699
        %v786 = vmul.f32 %v657, %v699
        %v787 = vmul.f32 %v658, %v699
        %v788 = vmul.f32 %v659, %v699
        %v789 = vmul.f32 %v660, %v699
        %v790 = vmul.f32 %v661, %v699
        %v791 = vmul.f32 %v662, %v699
        %v792 = vmul.f32 %v663, %v699
        %v793 = vmul.f32 %v664, %v699
        %v794 = vmul.f32 %v665, %v699
        %v795 = vmul.f32 %v666, %v699
        %v796 = vmul.f32 %v667, %v699
        %v797 = vmul.f32 %v668, %v699
        %v798 = vmul.f32 %v669, %v699
        %v799 = vmul.f32 %v670, %v699
        %v800 = vmul.f32 %v671, %v699
        %v801 = vmul.f32 %v672, %v699
        %v802 = vmul.f32 %v673, %v699
        %v803 = vmul.f32 %v674, %v699
        %v804 = vmul.f32 %v675, %v699
        %v805 = vmul.f32 %v676, %v699
        %v806 = vmul.f32 %v677, %v699
        %v807 = vmul.f32 %v678, %v699
        %v808 = vmul.f32 %v679, %v699
        %v809 = vmul.f32 %v680, %v699
        %v810 = vmul.f32 %v681, %v699
        %v811 = vmul.f32 %v682, %v699
        %v812 = vmul.f32 %v683, %v699
        %v813 = vmul.f32 %v684, %v699
        %v814 = vmul.f32 %v685, %v699
        %v815 = vmul.f32 %v686, %v699
        %v816 = vmul.f32 %v687, %v699
        %v817 = vmul.f32 %v688, %v699
        %v818 = vmul.f32 %v689, %v699
        %v819 = vmul.f32 %v690, %v699
        %v820 = vmul.f32 %v691, %v699
        %v821 = vmul.f32 %v692, %v699
        %v822 = vmul.f32 %v693, %v699
        %v823 = vmul.f32 %v694, %v699
        %v824 = vmul.f32 %v695, %v699
        %v825 = vmul.f32 %v696, %v699
        %v826 = vmul.f32 %v697, %v699
        %v827 = vmul.f32 %v698, %v699
        %v828 = vstv %s184
        %v829 = vadd.f32 %v700, %v828
        %v830 = vadd.f32 %v701, %v828
        %v831 = vadd.f32 %v702, %v828
        %v832 = vadd.f32 %v703, %v828
        %v833 = vadd.f32 %v704, %v828
        %v834 = vadd.f32 %v705, %v828
        %v835 = vadd.f32 %v706, %v828
        %v836 = vadd.f32 %v707, %v828
        %v837 = vadd.f32 %v708, %v828
        %v838 = vadd.f32 %v709, %v828
        %v839 = vadd.f32 %v710, %v828
        %v840 = vadd.f32 %v711, %v828
        %v841 = vadd.f32 %v712, %v828
        %v842 = vadd.f32 %v713, %v828
        %v843 = vadd.f32 %v714, %v828
        %v844 = vadd.f32 %v715, %v828
        %v845 = vadd.f32 %v716, %v828
        %v846 = vadd.f32 %v717, %v828
        %v847 = vadd.f32 %v718, %v828
        %v848 = vadd.f32 %v719, %v828
        %v849 = vadd.f32 %v720, %v828
        %v850 = vadd.f32 %v721, %v828
        %v851 = vadd.f32 %v722, %v828
        %v852 = vadd.f32 %v723, %v828
        %v853 = vadd.f32 %v724, %v828
        %v854 = vadd.f32 %v725, %v828
        %v855 = vadd.f32 %v726, %v828
        %v856 = vadd.f32 %v727, %v828
        %v857 = vadd.f32 %v728, %v828
        %v858 = vadd.f32 %v729, %v828
        %v859 = vadd.f32 %v730, %v828
        %v860 = vadd.f32 %v731, %v828
        %v861 = vadd.f32 %v732, %v828
        %v862 = vadd.f32 %v733, %v828
        %v863 = vadd.f32 %v734, %v828
        %v864 = vadd.f32 %v735, %v828
        %v865 = vadd.f32 %v736, %v828
        %v866 = vadd.f32 %v737, %v828
        %v867 = vadd.f32 %v738, %v828
        %v868 = vadd.f32 %v739, %v828
        %v869 = vadd.f32 %v740, %v828
        %v870 = vadd.f32 %v741, %v828
        %v871 = vadd.f32 %v742, %v828
        %v872 = vadd.f32 %v743, %v828
        %v873 = vadd.f32 %v744, %v828
        %v874 = vadd.f32 %v745, %v828
        %v875 = vadd.f32 %v746, %v828
        %v876 = vadd.f32 %v747, %v828
        %v877 = vadd.f32 %v748, %v828
        %v878 = vadd.f32 %v749, %v828
        %v879 = vadd.f32 %v750, %v828
        %v880 = vadd.f32 %v751, %v828
        %v881 = vadd.f32 %v752, %v828
        %v882 = vadd.f32 %v753, %v828
        %v883 = vadd.f32 %v754, %v828
        %v884 = vadd.f32 %v755, %v828
        %v885 = vadd.f32 %v756, %v828
        %v886 = vadd.f32 %v757, %v828
        %v887 = vadd.f32 %v758, %v828
        %v888 = vadd.f32 %v759, %v828
        %v889 = vadd.f32 %v760, %v828
        %v890 = vadd.f32 %v761, %v828
        %v891 = vadd.f32 %v762, %v828
        %v892 = vadd.f32 %v763, %v828
        %v893 = vadd.f32 %v764, %v828
        %v894 = vadd.f32 %v765, %v828
        %v895 = vadd.f32 %v766, %v828
        %v896 = vadd.f32 %v767, %v828
        %v897 = vadd.f32 %v768, %v828
        %v898 = vadd.f32 %v769, %v828
        %v899 = vadd.f32 %v770, %v828
        %v900 = vadd.f32 %v771, %v828
        %v901 = vadd.f32 %v772, %v828
        %v902 = vadd.f32 %v773, %v828
        %v903 = vadd.f32 %v774, %v828
        %v904 = vadd.f32 %v775, %v828
        %v905 = vadd.f32 %v776, %v828
        %v906 = vadd.f32 %v777, %v828
        %v907 = vadd.f32 %v778, %v828
        %v908 = vadd.f32 %v779, %v828
        %v909 = vadd.f32 %v780, %v828
        %v910 = vadd.f32 %v781, %v828
        %v911 = vadd.f32 %v782, %v828
        %v912 = vadd.f32 %v783, %v828
        %v913 = vadd.f32 %v784, %v828
        %v914 = vadd.f32 %v785, %v828
        %v915 = vadd.f32 %v786, %v828
        %v916 = vadd.f32 %v787, %v828
        %v917 = vadd.f32 %v788, %v828
        %v918 = vadd.f32 %v789, %v828
        %v919 = vadd.f32 %v790, %v828
        %v920 = vadd.f32 %v791, %v828
        %v921 = vadd.f32 %v792, %v828
        %v922 = vadd.f32 %v793, %v828
        %v923 = vadd.f32 %v794, %v828
        %v924 = vadd.f32 %v795, %v828
        %v925 = vadd.f32 %v796, %v828
        %v926 = vadd.f32 %v797, %v828
        %v927 = vadd.f32 %v798, %v828
        %v928 = vadd.f32 %v799, %v828
        %v929 = vadd.f32 %v800, %v828
        %v930 = vadd.f32 %v801, %v828
        %v931 = vadd.f32 %v802, %v828
        %v932 = vadd.f32 %v803, %v828
        %v933 = vadd.f32 %v804, %v828
        %v934 = vadd.f32 %v805, %v828
        %v935 = vadd.f32 %v806, %v828
        %v936 = vadd.f32 %v807, %v828
        %v937 = vadd.f32 %v808, %v828
        %v938 = vadd.f32 %v809, %v828
        %v939 = vadd.f32 %v810, %v828
        %v940 = vadd.f32 %v811, %v828
        %v941 = vadd.f32 %v812, %v828
        %v942 = vadd.f32 %v813, %v828
        %v943 = vadd.f32 %v814, %v828
        %v944 = vadd.f32 %v815, %v828
        %v945 = vadd.f32 %v816, %v828
        %v946 = vadd.f32 %v817, %v828
        %v947 = vadd.f32 %v818, %v828
        %v948 = vadd.f32 %v819, %v828
        %v949 = vadd.f32 %v820, %v828
        %v950 = vadd.f32 %v821, %v828
        %v951 = vadd.f32 %v822, %v828
        %v952 = vadd.f32 %v823, %v828
        %v953 = vadd.f32 %v824, %v828
        %v954 = vadd.f32 %v825, %v828
        %v955 = vadd.f32 %v826, %v828
        %v956 = vadd.f32 %v827, %v828
        %957 = vst [vmem:[%s178] sm:$0xff] %v829
        %958 = vst [vmem:[%s178 + $0x8] sm:$0xff] %v830
        %959 = vst [vmem:[%s178 + $0x10] sm:$0xff] %v831
        %960 = vst [vmem:[%s178 + $0x18] sm:$0xff] %v832
        %961 = vst [vmem:[%s178 + $0x20] sm:$0xff] %v833
        %962 = vst [vmem:[%s178 + $0x28] sm:$0xff] %v834
        %963 = vst [vmem:[%s178 + $0x30] sm:$0xff] %v835
        %964 = vst [vmem:[%s178 + $0x38] sm:$0xff] %v836
        %965 = vst [vmem:[%s178 + $0x40] sm:$0xff] %v837
        %966 = vst [vmem:[%s178 + $0x48] sm:$0xff] %v838
        %967 = vst [vmem:[%s178 + $0x50] sm:$0xff] %v839
        %968 = vst [vmem:[%s178 + $0x58] sm:$0xff] %v840
        %969 = vst [vmem:[%s178 + $0x60] sm:$0xff] %v841
        %970 = vst [vmem:[%s178 + $0x68] sm:$0xff] %v842
        %971 = vst [vmem:[%s178 + $0x70] sm:$0xff] %v843
        %972 = vst [vmem:[%s178 + $0x78] sm:$0xff] %v844
        %973 = vst [vmem:[%s178 + $0x80] sm:$0xff] %v845
        %974 = vst [vmem:[%s178 + $0x88] sm:$0xff] %v846
        %975 = vst [vmem:[%s178 + $0x90] sm:$0xff] %v847
        %976 = vst [vmem:[%s178 + $0x98] sm:$0xff] %v848
        %977 = vst [vmem:[%s178 + $0xa0] sm:$0xff] %v849
        %978 = vst [vmem:[%s178 + $0xa8] sm:$0xff] %v850
        %979 = vst [vmem:[%s178 + $0xb0] sm:$0xff] %v851
        %980 = vst [vmem:[%s178 + $0xb8] sm:$0xff] %v852
        %981 = vst [vmem:[%s178 + $0xc0] sm:$0xff] %v853
        %982 = vst [vmem:[%s178 + $0xc8] sm:$0xff] %v854
        %983 = vst [vmem:[%s178 + $0xd0] sm:$0xff] %v855
        %984 = vst [vmem:[%s178 + $0xd8] sm:$0xff] %v856
        %985 = vst [vmem:[%s178 + $0xe0] sm:$0xff] %v857
        %986 = vst [vmem:[%s178 + $0xe8] sm:$0xff] %v858
        %987 = vst [vmem:[%s178 + $0xf0] sm:$0xff] %v859
        %988 = vst [vmem:[%s178 + $0xf8] sm:$0xff] %v860
        %989 = vst [vmem:[%s178 + $0x100] sm:$0xff] %v861
        %990 = vst [vmem:[%s178 + $0x108] sm:$0xff] %v862
        %991 = vst [vmem:[%s178 + $0x110] sm:$0xff] %v863
        %992 = vst [vmem:[%s178 + $0x118] sm:$0xff] %v864
        %993 = vst [vmem:[%s178 + $0x120] sm:$0xff] %v865
        %994 = vst [vmem:[%s178 + $0x128] sm:$0xff] %v866
        %995 = vst [vmem:[%s178 + $0x130] sm:$0xff] %v867
        %996 = vst [vmem:[%s178 + $0x138] sm:$0xff] %v868
        %997 = vst [vmem:[%s178 + $0x140] sm:$0xff] %v869
        %998 = vst [vmem:[%s178 + $0x148] sm:$0xff] %v870
        %999 = vst [vmem:[%s178 + $0x150] sm:$0xff] %v871
        %1000 = vst [vmem:[%s178 + $0x158] sm:$0xff] %v872
        %1001 = vst [vmem:[%s178 + $0x160] sm:$0xff] %v873
        %1002 = vst [vmem:[%s178 + $0x168] sm:$0xff] %v874
        %1003 = vst [vmem:[%s178 + $0x170] sm:$0xff] %v875
        %1004 = vst [vmem:[%s178 + $0x178] sm:$0xff] %v876
        %1005 = vst [vmem:[%s178 + $0x180] sm:$0xff] %v877
        %1006 = vst [vmem:[%s178 + $0x188] sm:$0xff] %v878
        %1007 = vst [vmem:[%s178 + $0x190] sm:$0xff] %v879
        %1008 = vst [vmem:[%s178 + $0x198] sm:$0xff] %v880
        %1009 = vst [vmem:[%s178 + $0x1a0] sm:$0xff] %v881
        %1010 = vst [vmem:[%s178 + $0x1a8] sm:$0xff] %v882
        %1011 = vst [vmem:[%s178 + $0x1b0] sm:$0xff] %v883
        %1012 = vst [vmem:[%s178 + $0x1b8] sm:$0xff] %v884
        %1013 = vst [vmem:[%s178 + $0x1c0] sm:$0xff] %v885
        %1014 = vst [vmem:[%s178 + $0x1c8] sm:$0xff] %v886
        %1015 = vst [vmem:[%s178 + $0x1d0] sm:$0xff] %v887
        %1016 = vst [vmem:[%s178 + $0x1d8] sm:$0xff] %v888
        %1017 = vst [vmem:[%s178 + $0x1e0] sm:$0xff] %v889
        %1018 = vst [vmem:[%s178 + $0x1e8] sm:$0xff] %v890
        %1019 = vst [vmem:[%s178 + $0x1f0] sm:$0xff] %v891
        %1020 = vst [vmem:[%s178 + $0x1f8] sm:$0xff] %v892
        %1021 = vst [vmem:[%s178 + $0x200] sm:$0xff] %v893
        %1022 = vst [vmem:[%s178 + $0x208] sm:$0xff] %v894
        %1023 = vst [vmem:[%s178 + $0x210] sm:$0xff] %v895
        %1024 = vst [vmem:[%s178 + $0x218] sm:$0xff] %v896
        %1025 = vst [vmem:[%s178 + $0x220] sm:$0xff] %v897
        %1026 = vst [vmem:[%s178 + $0x228] sm:$0xff] %v898
        %1027 = vst [vmem:[%s178 + $0x230] sm:$0xff] %v899
        %1028 = vst [vmem:[%s178 + $0x238] sm:$0xff] %v900
        %1029 = vst [vmem:[%s178 + $0x240] sm:$0xff] %v901
        %1030 = vst [vmem:[%s178 + $0x248] sm:$0xff] %v902
        %1031 = vst [vmem:[%s178 + $0x250] sm:$0xff] %v903
        %1032 = vst [vmem:[%s178 + $0x258] sm:$0xff] %v904
        %1033 = vst [vmem:[%s178 + $0x260] sm:$0xff] %v905
        %1034 = vst [vmem:[%s178 + $0x268] sm:$0xff] %v906
        %1035 = vst [vmem:[%s178 + $0x270] sm:$0xff] %v907
        %1036 = vst [vmem:[%s178 + $0x278] sm:$0xff] %v908
        %1037 = vst [vmem:[%s178 + $0x280] sm:$0xff] %v909
        %1038 = vst [vmem:[%s178 + $0x288] sm:$0xff] %v910
        %1039 = vst [vmem:[%s178 + $0x290] sm:$0xff] %v911
        %1040 = vst [vmem:[%s178 + $0x298] sm:$0xff] %v912
        %1041 = vst [vmem:[%s178 + $0x2a0] sm:$0xff] %v913
        %1042 = vst [vmem:[%s178 + $0x2a8] sm:$0xff] %v914
        %1043 = vst [vmem:[%s178 + $0x2b0] sm:$0xff] %v915
        %1044 = vst [vmem:[%s178 + $0x2b8] sm:$0xff] %v916
        %1045 = vst [vmem:[%s178 + $0x2c0] sm:$0xff] %v917
        %1046 = vst [vmem:[%s178 + $0x2c8] sm:$0xff] %v918
        %1047 = vst [vmem:[%s178 + $0x2d0] sm:$0xff] %v919
        %1048 = vst [vmem:[%s178 + $0x2d8] sm:$0xff] %v920
        %1049 = vst [vmem:[%s178 + $0x2e0] sm:$0xff] %v921
        %1050 = vst [vmem:[%s178 + $0x2e8] sm:$0xff] %v922
        %1051 = vst [vmem:[%s178 + $0x2f0] sm:$0xff] %v923
        %1052 = vst [vmem:[%s178 + $0x2f8] sm:$0xff] %v924
        %1053 = vst [vmem:[%s178 + $0x300] sm:$0xff] %v925
        %1054 = vst [vmem:[%s178 + $0x308] sm:$0xff] %v926
        %1055 = vst [vmem:[%s178 + $0x310] sm:$0xff] %v927
        %1056 = vst [vmem:[%s178 + $0x318] sm:$0xff] %v928
        %1057 = vst [vmem:[%s178 + $0x320] sm:$0xff] %v929
        %1058 = vst [vmem:[%s178 + $0x328] sm:$0xff] %v930
        %1059 = vst [vmem:[%s178 + $0x330] sm:$0xff] %v931
        %1060 = vst [vmem:[%s178 + $0x338] sm:$0xff] %v932
        %1061 = vst [vmem:[%s178 + $0x340] sm:$0xff] %v933
        %1062 = vst [vmem:[%s178 + $0x348] sm:$0xff] %v934
        %1063 = vst [vmem:[%s178 + $0x350] sm:$0xff] %v935
        %1064 = vst [vmem:[%s178 + $0x358] sm:$0xff] %v936
        %1065 = vst [vmem:[%s178 + $0x360] sm:$0xff] %v937
        %1066 = vst [vmem:[%s178 + $0x368] sm:$0xff] %v938
        %1067 = vst [vmem:[%s178 + $0x370] sm:$0xff] %v939
        %1068 = vst [vmem:[%s178 + $0x378] sm:$0xff] %v940
        %1069 = vst [vmem:[%s178 + $0x380] sm:$0xff] %v941
        %1070 = vst [vmem:[%s178 + $0x388] sm:$0xff] %v942
        %1071 = vst [vmem:[%s178 + $0x390] sm:$0xff] %v943
        %1072 = vst [vmem:[%s178 + $0x398] sm:$0xff] %v944
        %1073 = vst [vmem:[%s178 + $0x3a0] sm:$0xff] %v945
        %1074 = vst [vmem:[%s178 + $0x3a8] sm:$0xff] %v946
        %1075 = vst [vmem:[%s178 + $0x3b0] sm:$0xff] %v947
        %1076 = vst [vmem:[%s178 + $0x3b8] sm:$0xff] %v948
        %1077 = vst [vmem:[%s178 + $0x3c0] sm:$0xff] %v949
        %1078 = vst [vmem:[%s178 + $0x3c8] sm:$0xff] %v950
        %1079 = vst [vmem:[%s178 + $0x3d0] sm:$0xff] %v951
        %1080 = vst [vmem:[%s178 + $0x3d8] sm:$0xff] %v952
        %1081 = vst [vmem:[%s178 + $0x3e0] sm:$0xff] %v953
        %1082 = vst [vmem:[%s178 + $0x3e8] sm:$0xff] %v954
        %1083 = vst [vmem:[%s178 + $0x3f0] sm:$0xff] %v955
        %1084 = vst [vmem:[%s178 + $0x3f8] sm:$0xff] %v956
        %s1085 = sand.u32 %s75, 1
        %s1086 = scalar_lea.sflag [#allocation4], %s1085
        %s1087 = sand.u32 %s75, 1
        %s1088 = smul.addr %s1087, 1024
        %s1089 = scalar_lea.vmem [#allocation7], %s1088
        // Predicated region
        $region37: #{tpu_custom_call.1} parent=27 // pred_check
          %p1090 = pneg %p85
        $region38: #{tpu_custom_call.1} parent=27 // pred_check_branch
          %1092 = sbr.rel (%p1090) target = $region40
        $region39: #{tpu_custom_call.1} parent=27 // pred_region
          %s1093 = smul.u32 4, %s20
          %1095 = vsyncadd %s1086, 0
          %s1096 = smul.addr %s1093, 32
          %s1097 = smul.addr %s1096, 8
          %s1098 = scalar_lea.hbm %s2, %s1097
          %s1099 = sshll.u32 %s1089, 4
          %s1100 = int_to_ptr.vmem [resolvable:$true] %s1099
          %s1101 = sshll.u32 %s1098, 4
          %s1102 = int_to_ptr.hbm [resolvable:$true] %s1101
          %1107 = dma.vmem_to_hbm [thread:$0]  %s1100, 16384, %s1102, %s1086, 4096, 4096, 256
        $region40: #{tpu_custom_call.1} parent=27 // pred_fallthru
          _
      $region28: #{tpu_custom_call.1} parent=5 // pred_fallthru
        _
      %p1108 = scmp.le.s32.totalorder 2, %s15
      // Predicated region
      $region41: #{tpu_custom_call.1} parent=5 // pred_check
        %p1109 = pneg %p1108
      $region42: #{tpu_custom_call.1} parent=5 // pred_check_branch
        %1111 = sbr.rel (%p1109) target = $region44
      $region43: #{tpu_custom_call.1} parent=5 // pred_region
        %s1112 = ssub.s32 %s15, 2
        // Predicated region
        $region45: #{tpu_custom_call.1} parent=43 // pred_check
          %p1113 = pneg %p91
        $region46: #{tpu_custom_call.1} parent=43 // pred_check_branch
          %1115 = sbr.rel (%p1113) target = $region48
        $region47: #{tpu_custom_call.1} parent=43 // pred_region
          %s1116 = sand.u32 %s76, 1
          %s1117 = scalar_lea.sflag [#allocation4], %s1116
          %s1118 = sand.u32 %s76, 1
          %s1119 = smul.addr %s1118, 1024
          %s1120 = scalar_lea.vmem [#allocation7], %s1119
          %1122 = dma.done %s1117, 16384
        $region48: #{tpu_custom_call.1} parent=43 // pred_fallthru
          _
      $region44: #{tpu_custom_call.1} parent=5 // pred_fallthru
        _
    $region6: #{tpu_custom_call.1} parent=1 // loop_footer
      %s19 = sadd.s32 1, %s15
    $region7: #{tpu_custom_call.1} parent=1 // loop_footer_branch
      %14 = sbr.rel target = $region3
    $region8: #{tpu_custom_call.1} parent=1 // loop_exit
      _
    %1123 = vsyncpa [#allocation3], 1
    %s1124 = scalar_lea.sflag [#allocation3], 1
    %1125 = vsyncpa %s1124, 1
    %1126 = vsyncpa [#allocation4], 1
    %s1127 = scalar_lea.sflag [#allocation4], 1
    %1128 = vsyncpa %s1127, 1
    %1129 = vsyncpa [#allocation5], 1
    %s1130 = scalar_lea.sflag [#allocation5], 1
    %1131 = vsyncpa %s1130, 1

</llo_original>
